<compile_context>
chip_gen: v5e
topology: v5e:2x2
jax: 0.10.0
libtpu: 0.0.40
codegen_flags: <defaults>
</compile_context>

<pallas_src>
import jax
import jax.numpy as jnp
from jax.experimental import pallas as pl
from jax.experimental.pallas import tpu as pltpu


def mlp_kernel(x_ref, w1_ref, b1_ref, w2_ref, b2_ref, o_ref):
    # x:  (tile_n, D_in)      w1: (D_in, H)        b1: (1, H)
    # w2: (H, D_out_padded)   b2: (1, D_out_padded)
    h = jnp.dot(x_ref[...], w1_ref[...], preferred_element_type=jnp.float32)
    h = jax.nn.sigmoid(h + b1_ref[...])          # logistic -> EUP slot
    out = jnp.dot(h, w2_ref[...], preferred_element_type=jnp.float32)
    o_ref[...] = (out + b2_ref[...]).astype(o_ref.dtype)


def net_forward(x, w1, b1, w2, b2, *, tile_n=256):
    """x: (N, D_in); w1: (H, D_in); b1: (H,); w2: (D_out, H); b2: (D_out,)."""
    N, D_in = x.shape
    H = w1.shape[0]
    D_out = w2.shape[0]

    # --- host-side layout plumbing (done once, outside the kernel) ---------
    w1_t = w1.T                                   # (D_in, H)
    w2_t = w2.T                                   # (H, D_out)
    b1_r = b1.reshape(1, H)

    # Lane-dense output: pad D_out up to a multiple of 128.
    d_out_p = max(128, 128 * pl.cdiv(D_out, 128))
    pad_cols = d_out_p - D_out
    w2_p = jnp.pad(w2_t, ((0, 0), (0, pad_cols)))
    b2_p = jnp.pad(b2.reshape(1, D_out), ((0, 0), (0, pad_cols)))

    # Batch tile: multiple of 8 (f32 sublane), no bigger than needed.
    tile_n = max(8, min(tile_n, 8 * pl.cdiv(N, 8)))
    tile_n = 8 * pl.cdiv(tile_n, 8)
    n_pad = tile_n * pl.cdiv(N, tile_n)
    x_p = jnp.pad(x, ((0, n_pad - N), (0, 0))) if n_pad != N else x

    grid = (n_pad // tile_n,)

    out = pl.pallas_call(
        mlp_kernel,
        out_shape=jax.ShapeDtypeStruct((n_pad, d_out_p), x.dtype),
        grid=grid,
        in_specs=[
            pl.BlockSpec((tile_n, D_in), lambda i: (i, 0)),   # x: tiled over batch
            pl.BlockSpec((D_in, H), lambda i: (0, 0)),        # w1: resident
            pl.BlockSpec((1, H), lambda i: (0, 0)),           # b1: resident
            pl.BlockSpec((H, d_out_p), lambda i: (0, 0)),     # w2: resident
            pl.BlockSpec((1, d_out_p), lambda i: (0, 0)),     # b2: resident
        ],
        out_specs=pl.BlockSpec((tile_n, d_out_p), lambda i: (i, 0)),
        compiler_params=pltpu.CompilerParams(
            dimension_semantics=("parallel",),   # lets v7x shard batch over 2 TCs
        ),
    )(x_p, w1_t, b1_r, w2_p, b2_p)

    # Strip batch + lane padding outside the kernel.
    return out[:N, :D_out]


def init_linear(key, out_features, in_features, dtype=jnp.float32):
    # Deterministic init mimicking PyTorch nn.Linear: U(-1/sqrt(fan_in), 1/sqrt(fan_in))
    kw, kb = jax.random.split(key)
    bound = 1.0 / jnp.sqrt(jnp.array(in_features, dtype))
    w = jax.random.uniform(kw, (out_features, in_features), dtype, -bound, bound)
    b = jax.random.uniform(kb, (out_features,), dtype, -bound, bound)
    return w, b


if __name__ == "__main__":
    key = jax.random.PRNGKey(0)
    k_x, k_l1, k_l2 = jax.random.split(key, 3)

    # Small shapes consistent with Net(D_in, H, D_out); N large enough to
    # exercise the batch grid (2 tiles of 32 rows).
    N, D_in, H, D_out = 64, 32, 32, 16

    x = jax.random.normal(k_x, (N, D_in), jnp.float32)
    w1, b1 = init_linear(k_l1, H, D_in)
    w2, b2 = init_linear(k_l2, D_out, H)

    out = net_forward(x, w1, b1, w2, b2, tile_n=32)
    jax.block_until_ready(out)

    # Reference check in plain JAX (PyTorch semantics: x @ W.T + b)
    h_ref = jax.nn.sigmoid(x @ w1.T + b1)
    ref = h_ref @ w2.T + b2
    assert out.shape == (N, D_out)
    assert jnp.allclose(out, ref, atol=1e-5, rtol=1e-5)

    print("KERNEL_OK")
</pallas_src>

<mosaic_0001>
module attributes {stable_mosaic.version = 11 : i64} {
  func.func @mlp_kernel(%arg0: i32, %arg1: memref<32x32xf32, #tpu.memory_space<vmem>>, %arg2: memref<32x32xf32, #tpu.memory_space<vmem>>, %arg3: memref<1x32xf32, #tpu.memory_space<vmem>>, %arg4: memref<32x128xf32, #tpu.memory_space<vmem>>, %arg5: memref<1x128xf32, #tpu.memory_space<vmem>>, %arg6: memref<32x128xf32, #tpu.memory_space<vmem>>) attributes {dimension_semantics = [#tpu.dimension_semantics<parallel>], iteration_bounds = array<i64: 2>, scalar_prefetch = 0 : i64, scratch_operands = 0 : i64, tpu.core_type = #tpu.core_type<tc>, window_params = [{transform_indices = @transform_0, window_bounds = array<i64: 32, 32>}, {pipeline_mode = #tpu.pipeline_mode<synchronous>, transform_indices = @transform_1, window_bounds = array<i64: 32, 32>}, {pipeline_mode = #tpu.pipeline_mode<synchronous>, transform_indices = @transform_2, window_bounds = array<i64: 1, 32>}, {pipeline_mode = #tpu.pipeline_mode<synchronous>, transform_indices = @transform_3, window_bounds = array<i64: 32, 128>}, {pipeline_mode = #tpu.pipeline_mode<synchronous>, transform_indices = @transform_4, window_bounds = array<i64: 1, 128>}, {transform_indices = @transform_5, window_bounds = array<i64: 32, 128>}]} {
    %c0 = arith.constant 0 : index
    %c0_0 = arith.constant 0 : index
    %0 = vector.load %arg1[%c0, %c0_0] : memref<32x32xf32, #tpu.memory_space<vmem>>, vector<32x32xf32>
    %c0_1 = arith.constant 0 : index
    %c0_2 = arith.constant 0 : index
    %1 = vector.load %arg2[%c0_1, %c0_2] : memref<32x32xf32, #tpu.memory_space<vmem>>, vector<32x32xf32>
    %cst = arith.constant dense<0.000000e+00> : vector<32x32xf32>
    %2 = tpu.matmul %0, %1, %cst {dimension_numbers = #tpu.dot_dimension_numbers<[1], [0], [0], [1], [0, 0, 1, 1], [], []>} : vector<32x32xf32>, vector<32x32xf32>, vector<32x32xf32> -> vector<32x32xf32>
    %c0_3 = arith.constant 0 : index
    %c0_4 = arith.constant 0 : index
    %3 = vector.load %arg3[%c0_3, %c0_4] : memref<1x32xf32, #tpu.memory_space<vmem>>, vector<1x32xf32>
    %4 = vector.broadcast %3 : vector<1x32xf32> to vector<32x32xf32>
    %5 = arith.addf %2, %4 : vector<32x32xf32>
    %6 = arith.negf %5 : vector<32x32xf32>
    %7 = math.exp %6 : vector<32x32xf32>
    %cst_5 = arith.constant 1.000000e+00 : f32
    %8 = vector.broadcast %cst_5 : f32 to vector<32x32xf32>
    %9 = arith.addf %8, %7 : vector<32x32xf32>
    %10 = arith.divf %8, %9 : vector<32x32xf32>
    %c0_6 = arith.constant 0 : index
    %c0_7 = arith.constant 0 : index
    %11 = vector.load %arg4[%c0_6, %c0_7] : memref<32x128xf32, #tpu.memory_space<vmem>>, vector<32x128xf32>
    %cst_8 = arith.constant dense<0.000000e+00> : vector<32x128xf32>
    %12 = tpu.matmul %10, %11, %cst_8 {dimension_numbers = #tpu.dot_dimension_numbers<[1], [0], [0], [1], [0, 0, 1, 1], [], []>} : vector<32x32xf32>, vector<32x128xf32>, vector<32x128xf32> -> vector<32x128xf32>
    %c0_9 = arith.constant 0 : index
    %c0_10 = arith.constant 0 : index
    %13 = vector.load %arg5[%c0_9, %c0_10] : memref<1x128xf32, #tpu.memory_space<vmem>>, vector<1x128xf32>
    %14 = vector.broadcast %13 : vector<1x128xf32> to vector<32x128xf32>
    %15 = arith.addf %12, %14 : vector<32x128xf32>
    %c0_11 = arith.constant 0 : index
    %c0_12 = arith.constant 0 : index
    %16 = vector.load %arg6[%c0_11, %c0_12] : memref<32x128xf32, #tpu.memory_space<vmem>>, vector<32x128xf32>
    tpu.vector_store %arg6[%c0_11, %c0_12], %15 {strides = array<i32>} : memref<32x128xf32, #tpu.memory_space<vmem>>, vector<32x128xf32>,
    return
  }
  func.func @transform_0(%arg0: i32) -> (i32, i32) {
    %c0_i32 = arith.constant 0 : i32
    %c0_i32_0 = arith.constant 0 : i32
    return %arg0, %c0_i32 : i32, i32
  }
  func.func @transform_1(%arg0: i32) -> (i32, i32) {
    %c0_i32 = arith.constant 0 : i32
    %c0_i32_0 = arith.constant 0 : i32
    %c0_i32_1 = arith.constant 0 : i32
    return %c0_i32, %c0_i32_0 : i32, i32
  }
  func.func @transform_2(%arg0: i32) -> (i32, i32) {
    %c0_i32 = arith.constant 0 : i32
    %c0_i32_0 = arith.constant 0 : i32
    %c0_i32_1 = arith.constant 0 : i32
    return %c0_i32, %c0_i32_0 : i32, i32
  }
  func.func @transform_3(%arg0: i32) -> (i32, i32) {
    %c0_i32 = arith.constant 0 : i32
    %c0_i32_0 = arith.constant 0 : i32
    %c0_i32_1 = arith.constant 0 : i32
    return %c0_i32, %c0_i32_0 : i32, i32
  }
  func.func @transform_4(%arg0: i32) -> (i32, i32) {
    %c0_i32 = arith.constant 0 : i32
    %c0_i32_0 = arith.constant 0 : i32
    %c0_i32_1 = arith.constant 0 : i32
    return %c0_i32, %c0_i32_0 : i32, i32
  }
  func.func @transform_5(%arg0: i32) -> (i32, i32) {
    %c0_i32 = arith.constant 0 : i32
    %c0_i32_0 = arith.constant 0 : i32
    return %arg0, %c0_i32 : i32, i32
  }
}

</mosaic_0001>

<llo_original>
// kernel: tpu_custom_call.1
$region0: #{tpu_custom_call.1}
  #allocation0 [shape = 'u32[]', space=smem, size = 0x4, offset = 0x4, fixed_abs, tag = 'smem constant byte address 0x4 - core index']
  #allocation1 [shape = 'u32[72,128]{1,0:T(1,128)}', space=vmem, size = 0x9000, scoped, tag = 'internal scratch']
  %s0 = inlined_call_operand.vmem [shape: f32[64,32], index: 0, kind: input, shape index: {}]
  %s1 = inlined_call_operand.vmem [shape: f32[32,32], index: 1, kind: input, shape index: {}]
  %s2 = inlined_call_operand.vmem [shape: f32[1,32], index: 2, kind: input, shape index: {}]
  %s3 = inlined_call_operand.vmem [shape: f32[32,128], index: 3, kind: input, shape index: {}]
  %s4 = inlined_call_operand.vmem [shape: f32[1,128], index: 4, kind: input, shape index: {}]
  %s5 = inlined_call_operand.hbm [shape: f32[64,128], index: 5, kind: output, shape index: {}]
  %s6 = sld [smem:[#allocation0]]
  $region53: #{tpu_custom_call.1} parent=0
    _
  %s8 = ssub.s32 1, %s6
  %s9 = scalar_select 0, %s8, %s6
  $region1: #{tpu_custom_call.1} parent=0
    #allocation2 [shape = 'u8[32768]{0}', space=vmem, size = 0x8000, scoped, tag = 'output window, operand 0']
    #allocation3 [shape = 's32[2]{0}', space=sflag, size = 0x8, scoped, tag = 'scoped memory for tpu_custom_call.1']
    %10 = vsyncpa [#allocation3], 0
    %s11 = scalar_lea.sflag [#allocation3], 1
    %12 = vsyncpa %s11, 0
    loop: start=0, step=1, limit=4
    $region2: #{tpu_custom_call.1} parent=1 // loop_pre_header
      _
    $region3: #{tpu_custom_call.1} parent=1 // loop_header
      %s14 = sphi 0, %s18
      %p15 = scmp.ge.s32.totalorder %s14, 4
      %s24 = sphi 0, %s26
      %s27 = sphi 0, %s24
      %s28 = sphi 0, %s27
      %s44 = sphi 0, %s28
      %s48 = sphi 0, %s48
      %s50 = sphi 0, %s48
      %s51 = sphi 0, %s50
      %s65 = sphi 0, %s51
      %s69 = sphi 0, %s69
      %s71 = sphi 0, %s69
      %s72 = sphi 0, %s71
      %s86 = sphi 0, %s72
      %s90 = sphi 0, %s90
      %s92 = sphi 0, %s90
      %s93 = sphi 0, %s92
      %s107 = sphi 0, %s93
      %s111 = sphi 0, %s111
      %s113 = sphi 0, %s111
      %s114 = sphi 0, %s113
      %s128 = sphi 0, %s114
      %s134 = sphi 0, %s136
      %s137 = sphi 0, %s134
      %s138 = sphi 0, %s137
      %s154 = sphi 0, %s138
    $region4: #{tpu_custom_call.1} parent=1 // loop_header_branch
      %17 = sbr.rel (%p15) target = $region8
    $region5: #{tpu_custom_call.1} parent=1 // loop_body
      %s19 = ssub.s32 %s14, 1
      %s20 = ssub.s32 %s14, 2
      %s21 = sadd.s32 %s14, 1
      %s22 = ssub.s32 %s14, %s21
      %p23 = scmp.eq.s32.totalorder %s22, 0
      %s25 = sadd.s32 %s24, 1
      %s26 = scalar_select %p23, %s24, %s25
      %p29 = pneg %p23
      %p30 = scmp.eq.s32.totalorder %s14, 1
      %p31 = por %p29, %p30
      %p32 = scmp.ne.s32.totalorder %s24, %s27
      %p33 = scmp.eq.s32.totalorder %s14, 0
      %p34 = por %p32, %p33
      %p35 = scmp.ne.s32.totalorder %s24, %s27
      %p36 = scmp.eq.s32.totalorder %s19, 1
      %p37 = por %p35, %p36
      %p38 = scmp.ne.s32.totalorder %s27, %s28
      %p39 = scmp.eq.s32.totalorder %s19, 0
      %p40 = por %p38, %p39
      %p41 = scmp.ne.s32.totalorder %s27, %s28
      %p42 = scmp.eq.s32.totalorder %s20, 1
      %p43 = por %p41, %p42
      %p45 = scmp.ne.s32.totalorder %s28, %s44
      %p46 = scmp.eq.s32.totalorder %s20, 0
      %p47 = por %p45, %p46
      %s49 = sadd.s32 %s48, 1
      %p52 = scmp.eq.s32.totalorder %s14, 1
      %p53 = scmp.ne.s32.totalorder %s48, %s50
      %p54 = scmp.eq.s32.totalorder %s14, 0
      %p55 = por %p53, %p54
      %p56 = scmp.ne.s32.totalorder %s48, %s50
      %p57 = scmp.eq.s32.totalorder %s19, 1
      %p58 = por %p56, %p57
      %p59 = scmp.ne.s32.totalorder %s50, %s51
      %p60 = scmp.eq.s32.totalorder %s19, 0
      %p61 = por %p59, %p60
      %p62 = scmp.ne.s32.totalorder %s50, %s51
      %p63 = scmp.eq.s32.totalorder %s20, 1
      %p64 = por %p62, %p63
      %p66 = scmp.ne.s32.totalorder %s51, %s65
      %p67 = scmp.eq.s32.totalorder %s20, 0
      %p68 = por %p66, %p67
      %s70 = sadd.s32 %s69, 1
      %p73 = scmp.eq.s32.totalorder %s14, 1
      %p74 = scmp.ne.s32.totalorder %s69, %s71
      %p75 = scmp.eq.s32.totalorder %s14, 0
      %p76 = por %p74, %p75
      %p77 = scmp.ne.s32.totalorder %s69, %s71
      %p78 = scmp.eq.s32.totalorder %s19, 1
      %p79 = por %p77, %p78
      %p80 = scmp.ne.s32.totalorder %s71, %s72
      %p81 = scmp.eq.s32.totalorder %s19, 0
      %p82 = por %p80, %p81
      %p83 = scmp.ne.s32.totalorder %s71, %s72
      %p84 = scmp.eq.s32.totalorder %s20, 1
      %p85 = por %p83, %p84
      %p87 = scmp.ne.s32.totalorder %s72, %s86
      %p88 = scmp.eq.s32.totalorder %s20, 0
      %p89 = por %p87, %p88
      %s91 = sadd.s32 %s90, 1
      %p94 = scmp.eq.s32.totalorder %s14, 1
      %p95 = scmp.ne.s32.totalorder %s90, %s92
      %p96 = scmp.eq.s32.totalorder %s14, 0
      %p97 = por %p95, %p96
      %p98 = scmp.ne.s32.totalorder %s90, %s92
      %p99 = scmp.eq.s32.totalorder %s19, 1
      %p100 = por %p98, %p99
      %p101 = scmp.ne.s32.totalorder %s92, %s93
      %p102 = scmp.eq.s32.totalorder %s19, 0
      %p103 = por %p101, %p102
      %p104 = scmp.ne.s32.totalorder %s92, %s93
      %p105 = scmp.eq.s32.totalorder %s20, 1
      %p106 = por %p104, %p105
      %p108 = scmp.ne.s32.totalorder %s93, %s107
      %p109 = scmp.eq.s32.totalorder %s20, 0
      %p110 = por %p108, %p109
      %s112 = sadd.s32 %s111, 1
      %p115 = scmp.eq.s32.totalorder %s14, 1
      %p116 = scmp.ne.s32.totalorder %s111, %s113
      %p117 = scmp.eq.s32.totalorder %s14, 0
      %p118 = por %p116, %p117
      %p119 = scmp.ne.s32.totalorder %s111, %s113
      %p120 = scmp.eq.s32.totalorder %s19, 1
      %p121 = por %p119, %p120
      %p122 = scmp.ne.s32.totalorder %s113, %s114
      %p123 = scmp.eq.s32.totalorder %s19, 0
      %p124 = por %p122, %p123
      %p125 = scmp.ne.s32.totalorder %s113, %s114
      %p126 = scmp.eq.s32.totalorder %s20, 1
      %p127 = por %p125, %p126
      %p129 = scmp.ne.s32.totalorder %s114, %s128
      %p130 = scmp.eq.s32.totalorder %s20, 0
      %p131 = por %p129, %p130
      %s132 = ssub.s32 %s14, %s21
      %p133 = scmp.eq.s32.totalorder %s132, 0
      %s135 = sadd.s32 %s134, 1
      %s136 = scalar_select %p133, %s134, %s135
      %p139 = pneg %p133
      %p140 = scmp.eq.s32.totalorder %s14, 1
      %p141 = por %p139, %p140
      %p142 = scmp.ne.s32.totalorder %s134, %s137
      %p143 = scmp.eq.s32.totalorder %s14, 0
      %p144 = por %p142, %p143
      %p145 = scmp.ne.s32.totalorder %s134, %s137
      %p146 = scmp.eq.s32.totalorder %s19, 1
      %p147 = por %p145, %p146
      %p148 = scmp.ne.s32.totalorder %s137, %s138
      %p149 = scmp.eq.s32.totalorder %s19, 0
      %p150 = por %p148, %p149
      %p151 = scmp.ne.s32.totalorder %s137, %s138
      %p152 = scmp.eq.s32.totalorder %s20, 1
      %p153 = por %p151, %p152
      %p155 = scmp.ne.s32.totalorder %s138, %s154
      %p156 = scmp.eq.s32.totalorder %s20, 0
      %p157 = por %p155, %p156
      %p158 = scmp.le.s32.totalorder 1, %s14
      %p159 = scmp.lt.s32.totalorder %s14, 3
      %p160 = pnand %p158, %p159
      %p161 = pneg %p160
      // Predicated region
      $region9: #{tpu_custom_call.1} parent=5 // pred_check
        _
      $region10: #{tpu_custom_call.1} parent=5 // pred_check_branch
        %163 = sbr.rel (%p160) target = $region12
      $region11: #{tpu_custom_call.1} parent=5 // pred_region
        %s164 = ssub.s32 %s14, 1
        // Predicated region
        $region13: #{tpu_custom_call.1} parent=11 // pred_check
          %p165 = pneg %p61
        $region14: #{tpu_custom_call.1} parent=11 // pred_check_branch
          %167 = sbr.rel (%p165) target = $region16
        $region15: #{tpu_custom_call.1} parent=11 // pred_region
          _
        $region16: #{tpu_custom_call.1} parent=11 // pred_fallthru
          _
        // Predicated region
        $region17: #{tpu_custom_call.1} parent=11 // pred_check
          %p168 = pneg %p82
        $region18: #{tpu_custom_call.1} parent=11 // pred_check_branch
          %170 = sbr.rel (%p168) target = $region20
        $region19: #{tpu_custom_call.1} parent=11 // pred_region
          _
        $region20: #{tpu_custom_call.1} parent=11 // pred_fallthru
          _
        // Predicated region
        $region21: #{tpu_custom_call.1} parent=11 // pred_check
          %p171 = pneg %p103
        $region22: #{tpu_custom_call.1} parent=11 // pred_check_branch
          %173 = sbr.rel (%p171) target = $region24
        $region23: #{tpu_custom_call.1} parent=11 // pred_region
          _
        $region24: #{tpu_custom_call.1} parent=11 // pred_fallthru
          _
        // Predicated region
        $region25: #{tpu_custom_call.1} parent=11 // pred_check
          %p174 = pneg %p124
        $region26: #{tpu_custom_call.1} parent=11 // pred_check_branch
          %176 = sbr.rel (%p174) target = $region28
        $region27: #{tpu_custom_call.1} parent=11 // pred_region
          _
        $region28: #{tpu_custom_call.1} parent=11 // pred_fallthru
          _
      $region12: #{tpu_custom_call.1} parent=5 // pred_fallthru
        _
      %p177 = scmp.lt.s32.totalorder %s14, 2
      // Predicated region
      $region29: #{tpu_custom_call.1} parent=5 // pred_check
        %p178 = pneg %p177
      $region30: #{tpu_custom_call.1} parent=5 // pred_check_branch
        %180 = sbr.rel (%p178) target = $region32
      $region31: #{tpu_custom_call.1} parent=5 // pred_region
        // Predicated region
        $region33: #{tpu_custom_call.1} parent=31 // pred_check
          %p181 = pneg %p34
        $region34: #{tpu_custom_call.1} parent=31 // pred_check_branch
          %183 = sbr.rel (%p181) target = $region36
        $region35: #{tpu_custom_call.1} parent=31 // pred_region
          %s184 = smul.u32 4, %s14
          %p185 = scmp.lt.s32.totalorder %s184, 7
          %s186 = scalar_select %p185, %s184, 7
          %s187 = smul.addr %s186, 8
          %s188 = scalar_lea.vmem %s0, %s187
          %s189 = smul.u32 4, %s14
        $region36: #{tpu_custom_call.1} parent=31 // pred_fallthru
          _
      $region32: #{tpu_custom_call.1} parent=5 // pred_fallthru
        _
      %p190 = scmp.le.s32.totalorder 1, %s14
      %p191 = scmp.lt.s32.totalorder %s14, 3
      %p192 = pnand %p190, %p191
      %p193 = pneg %p192
      // Predicated region
      $region37: #{tpu_custom_call.1} parent=5 // pred_check
        _
      $region38: #{tpu_custom_call.1} parent=5 // pred_check_branch
        %195 = sbr.rel (%p192) target = $region40
      $region39: #{tpu_custom_call.1} parent=5 // pred_region
        %s196 = ssub.s32 %s14, 1
        %s197 = smul.u32 4, %s19
        %p198 = scmp.lt.s32.totalorder %s197, 7
        %s199 = scalar_select %p198, %s197, 7
        %s200 = smul.addr %s199, 8
        %s201 = scalar_lea.vmem %s0, %s200
        %p202 = pneg %p40
        %p203 = pneg %p37
        %p204 = pneg %p61
        %p205 = pneg %p58
        %p206 = pneg %p82
        %p207 = pneg %p79
        %p208 = pneg %p103
        %p209 = pneg %p100
        %p210 = pneg %p124
        %p211 = pneg %p121
        %p212 = pneg %p150
        %p213 = pneg %p147
        %s214 = sand.u32 %s137, 1
        %s215 = scalar_lea.sflag [#allocation3], %s214
        %s216 = sand.u32 %s137, 1
        %s217 = smul.addr %s216, 32
        %s218 = scalar_lea.vmem [#allocation2], %s217
        %s219 = smul.u32 4, %s19
        %p220 = scmp.lt.s32.totalorder %s219, 7
        %s221 = scalar_select %p220, %s219, 7
        %s222 = smul.addr %s221, 8
        %s223 = scalar_lea.vmem %s0, %s222
        %s224 = smul.u32 4, %s19
        %s225 = smul.u32 4, %s19
        %v226 = vld [vmem:[%s223] sm:$0xff]
        %v227 = vld [vmem:[%s223 + $0x8] sm:$0xff]
        %v228 = vld [vmem:[%s223 + $0x10] sm:$0xff]
        %v229 = vld [vmem:[%s223 + $0x18] sm:$0xff]
        %v230 = vld [vmem:[%s1] sm:$0xff]
        %v231 = vld [vmem:[%s1 + $0x8] sm:$0xff]
        %v232 = vld [vmem:[%s1 + $0x10] sm:$0xff]
        %v233 = vld [vmem:[%s1 + $0x18] sm:$0xff]
        %v234 = vld [vmem:[%s2] sm:$0x1]
        %v236 = vperm.slane %v234, 0
        %vm238 = vcmask 261120
        %v240 = vsel %vm238, %v226, 0
        %v243 = vsel %vm238, %v227, 0
        %v246 = vsel %vm238, %v228, 0
        %v249 = vsel %vm238, %v229, 0
        %251 = vmatpush.msra.mxu0 0.0
        %252 = vmatpush.msra.mxu0 0.0
        %253 = vmatpush.msra.mxu0 0.0
        %254 = vmatpush.msra.mxu0 0.0
        %255 = vmatpush.msra.mxu0 0.0
        %256 = vmatpush.msra.mxu0 0.0
        %257 = vmatpush.msra.mxu0 0.0
        %258 = vmatpush.msra.mxu0 0.0
        %259 = vmatpush.msra.mxu0 0.0
        %260 = vmatpush.msra.mxu0 0.0
        %261 = vmatpush.msra.mxu0 0.0
        %262 = vmatpush.msra.mxu0 0.0
        %263 = vmatpush.msra.mxu0 %v233
        %264 = vmatpush.msra.mxu0 %v232
        %265 = vmatpush.msra.mxu0 %v231
        %266 = vmatpush.msra.mxu0 %v230
        %267 = vmatmul.f32.gmra.mxu0 %v240
        %v268 = vpop.f32.mrf.mxu0
        %v269 = vadd.f32 %v236, %v268
        %270 = vmatmul.f32.gmra.mxu0 %v243
        %v271 = vpop.f32.mrf.mxu0
        %v272 = vadd.f32 %v236, %v271
        %273 = vmatmul.f32.gmra.mxu0 %v246
        %v274 = vpop.f32.mrf.mxu0
        %v275 = vadd.f32 %v236, %v274
        %276 = vmatmul.f32.gmra.mxu0 %v249
        %v277 = vpop.f32.mrf.mxu0
        %v278 = vadd.f32 %v236, %v277
        %279 = vdwg.mxu0
        %v280 = vxor.u32 %v269, 2147483648
        %v281 = vxor.u32 %v272, 2147483648
        %v282 = vxor.u32 %v275, 2147483648
        %v283 = vxor.u32 %v278, 2147483648
        %v284 = vmul.f32 %v280, 1.442695
        %v285 = vpow.pop %v284
        %v286 = vmul.f32 %v281, 1.442695
        %v287 = vpow.pop %v286
        %v288 = vmul.f32 %v282, 1.442695
        %v289 = vpow.pop %v288
        %v290 = vmul.f32 %v283, 1.442695
        %v291 = vpow.pop %v290
        %v292 = vadd.f32 %v285, 1.0
        %v293 = vadd.f32 %v287, 1.0
        %v294 = vadd.f32 %v289, 1.0
        %v295 = vadd.f32 %v291, 1.0
        %v296 = vrcp.pop %v292
        %v297 = vmul.f32 %v292, %v296
        %v298 = vsub.f32 1.0, %v297
        %v299 = vmul.f32 %v296, %v298
        %v300 = vadd.f32 %v296, %v299
        %vm301 = vweird.f32 %v292
        %vm302 = vweird.f32 %v296
        %vm303 = vmor %vm301, %vm302
        %v304 = vsel %vm303, %v296, %v300
        %v305 = vand.u32 2147483647, %v292
        %vm306 = vcmp.eq.f32.partialorder %v305, 8.507059e+37
        %v307 = vand.u32 %v292, 2147483648
        %v308 = vor.u32 1.1754944e-38, %v307
        %v309 = vsel %vm306, %v308, %v304
        %v310 = vmul.f32 1.0, %v309
        %v311 = vrcp.pop %v293
        %v312 = vmul.f32 %v293, %v311
        %v313 = vsub.f32 1.0, %v312
        %v314 = vmul.f32 %v311, %v313
        %v315 = vadd.f32 %v311, %v314
        %vm316 = vweird.f32 %v293
        %vm317 = vweird.f32 %v311
        %vm318 = vmor %vm316, %vm317
        %v319 = vsel %vm318, %v311, %v315
        %v320 = vand.u32 2147483647, %v293
        %vm321 = vcmp.eq.f32.partialorder %v320, 8.507059e+37
        %v322 = vand.u32 %v293, 2147483648
        %v323 = vor.u32 1.1754944e-38, %v322
        %v324 = vsel %vm321, %v323, %v319
        %v325 = vmul.f32 1.0, %v324
        %v326 = vrcp.pop %v294
        %v327 = vmul.f32 %v294, %v326
        %v328 = vsub.f32 1.0, %v327
        %v329 = vmul.f32 %v326, %v328
        %v330 = vadd.f32 %v326, %v329
        %vm331 = vweird.f32 %v294
        %vm332 = vweird.f32 %v326
        %vm333 = vmor %vm331, %vm332
        %v334 = vsel %vm333, %v326, %v330
        %v335 = vand.u32 2147483647, %v294
        %vm336 = vcmp.eq.f32.partialorder %v335, 8.507059e+37
        %v337 = vand.u32 %v294, 2147483648
        %v338 = vor.u32 1.1754944e-38, %v337
        %v339 = vsel %vm336, %v338, %v334
        %v340 = vmul.f32 1.0, %v339
        %v341 = vrcp.pop %v295
        %v342 = vmul.f32 %v295, %v341
        %v343 = vsub.f32 1.0, %v342
        %v344 = vmul.f32 %v341, %v343
        %v345 = vadd.f32 %v341, %v344
        %vm346 = vweird.f32 %v295
        %vm347 = vweird.f32 %v341
        %vm348 = vmor %vm346, %vm347
        %v349 = vsel %vm348, %v341, %v345
        %v350 = vand.u32 2147483647, %v295
        %vm351 = vcmp.eq.f32.partialorder %v350, 8.507059e+37
        %v352 = vand.u32 %v295, 2147483648
        %v353 = vor.u32 1.1754944e-38, %v352
        %v354 = vsel %vm351, %v353, %v349
        %v355 = vmul.f32 1.0, %v354
        %v356 = vld [vmem:[%s3] sm:$0xff]
        %v357 = vld [vmem:[%s3 + $0x8] sm:$0xff]
        %v358 = vld [vmem:[%s3 + $0x10] sm:$0xff]
        %v359 = vld [vmem:[%s3 + $0x18] sm:$0xff]
        %v360 = vld [vmem:[%s4] sm:$0x1]
        %v362 = vperm.slane %v360, 0
        %v365 = vsel %vm238, %v310, 0
        %v368 = vsel %vm238, %v325, 0
        %v371 = vsel %vm238, %v340, 0
        %v374 = vsel %vm238, %v355, 0
        %376 = vmatpush.msra.mxu0 0.0
        %377 = vmatpush.msra.mxu0 0.0
        %378 = vmatpush.msra.mxu0 0.0
        %379 = vmatpush.msra.mxu0 0.0
        %380 = vmatpush.msra.mxu0 0.0
        %381 = vmatpush.msra.mxu0 0.0
        %382 = vmatpush.msra.mxu0 0.0
        %383 = vmatpush.msra.mxu0 0.0
        %384 = vmatpush.msra.mxu0 0.0
        %385 = vmatpush.msra.mxu0 0.0
        %386 = vmatpush.msra.mxu0 0.0
        %387 = vmatpush.msra.mxu0 0.0
        %388 = vmatpush.msra.mxu0 %v359
        %389 = vmatpush.msra.mxu0 %v358
        %390 = vmatpush.msra.mxu0 %v357
        %391 = vmatpush.msra.mxu0 %v356
        %392 = vmatmul.f32.gmra.mxu0 %v365
        %v393 = vpop.f32.mrf.mxu0
        %v394 = vadd.f32 %v362, %v393
        %395 = vmatmul.f32.gmra.mxu0 %v368
        %v396 = vpop.f32.mrf.mxu0
        %v397 = vadd.f32 %v362, %v396
        %398 = vmatmul.f32.gmra.mxu0 %v371
        %v399 = vpop.f32.mrf.mxu0
        %v400 = vadd.f32 %v362, %v399
        %401 = vmatmul.f32.gmra.mxu0 %v374
        %v402 = vpop.f32.mrf.mxu0
        %v403 = vadd.f32 %v362, %v402
        %404 = vdwg.mxu0
        %405 = vst [vmem:[%s218] sm:$0xff] %v394
        %406 = vst [vmem:[%s218 + $0x8] sm:$0xff] %v397
        %407 = vst [vmem:[%s218 + $0x10] sm:$0xff] %v400
        %408 = vst [vmem:[%s218 + $0x18] sm:$0xff] %v403
        %s409 = sand.u32 %s137, 1
        %s410 = scalar_lea.sflag [#allocation3], %s409
        %s411 = sand.u32 %s137, 1
        %s412 = smul.addr %s411, 32
        %s413 = scalar_lea.vmem [#allocation2], %s412
        // Predicated region
        $region41: #{tpu_custom_call.1} parent=39 // pred_check
          %p414 = pneg %p147
        $region42: #{tpu_custom_call.1} parent=39 // pred_check_branch
          %416 = sbr.rel (%p414) target = $region44
        $region43: #{tpu_custom_call.1} parent=39 // pred_region
          %s417 = smul.u32 4, %s19
          %419 = vsyncadd %s410, 0
          %s420 = smul.addr %s417, 8
          %s421 = scalar_lea.hbm %s5, %s420
          %s422 = sshll.u32 %s413, 4
          %s423 = int_to_ptr.vmem [resolvable:$true] %s422
          %s424 = sshll.u32 %s421, 4
          %s425 = int_to_ptr.hbm [resolvable:$true] %s424
          %430 = dma.vmem_to_hbm [thread:$0]  %s423, 512, %s425, %s410, 128, 128, 8
        $region44: #{tpu_custom_call.1} parent=39 // pred_fallthru
          _
      $region40: #{tpu_custom_call.1} parent=5 // pred_fallthru
        _
      %p431 = scmp.le.s32.totalorder 2, %s14
      // Predicated region
      $region45: #{tpu_custom_call.1} parent=5 // pred_check
        %p432 = pneg %p431
      $region46: #{tpu_custom_call.1} parent=5 // pred_check_branch
        %434 = sbr.rel (%p432) target = $region48
      $region47: #{tpu_custom_call.1} parent=5 // pred_region
        %s435 = ssub.s32 %s14, 2
        // Predicated region
        $region49: #{tpu_custom_call.1} parent=47 // pred_check
          %p436 = pneg %p153
        $region50: #{tpu_custom_call.1} parent=47 // pred_check_branch
          %438 = sbr.rel (%p436) target = $region52
        $region51: #{tpu_custom_call.1} parent=47 // pred_region
          %s439 = sand.u32 %s138, 1
          %s440 = scalar_lea.sflag [#allocation3], %s439
          %s441 = sand.u32 %s138, 1
          %s442 = smul.addr %s441, 32
          %s443 = scalar_lea.vmem [#allocation2], %s442
          %445 = dma.done %s440, 512
        $region52: #{tpu_custom_call.1} parent=47 // pred_fallthru
          _
      $region48: #{tpu_custom_call.1} parent=5 // pred_fallthru
        _
    $region6: #{tpu_custom_call.1} parent=1 // loop_footer
      %s18 = sadd.s32 1, %s14
    $region7: #{tpu_custom_call.1} parent=1 // loop_footer_branch
      %13 = sbr.rel target = $region3
    $region8: #{tpu_custom_call.1} parent=1 // loop_exit
      _
    %446 = vsyncpa [#allocation3], 1
    %s447 = scalar_lea.sflag [#allocation3], 1
    %448 = vsyncpa %s447, 1

</llo_original>
